<compile_context>
chip_gen: v7x
topology: tpu7x:2x2x1
jax: 0.10.0
libtpu: 0.0.40
codegen_flags: <defaults>
</compile_context>

<pallas_src>
import jax
import jax.numpy as jnp
from jax.experimental import pallas as pl
from jax.experimental.pallas import tpu as pltpu

# ---- Module hyperparameters (mirror the PyTorch script) ----
batch_size = 1
sequence_length = 1
input_size = 5
hidden_size = 5
num_layers = 1
num_classes = 5

# Padded tile sizes for TPU vreg alignment
BP = 8     # padded batch (sublane multiple)
FP = 128   # padded feature lanes (input and hidden each pad to one 128-lane tile)


def fused_rnn_forward_kernel(x_ref, h0_ref, w_ih_ref, w_hh_ref, b_ref,
                             hidden_out_ref, out_ref, xpad_ref, hpad_ref):
    """Full forward: for t in seq: h = tanh(x_t @ W_ih^T + h @ W_hh^T + b); emit h.

    x_ref:  (B, S, I) f32             h0_ref: (L, B, H) f32
    w_ih_ref / w_hh_ref: (FP, FP) f32 (transposed, zero-padded weights)
    b_ref:  (1, FP) f32               (b_ih + b_hh, zero-padded lanes)
    hidden_out_ref: (L, B, H) f32     out_ref: (B*S, C) f32
    xpad_ref / hpad_ref: (BP, FP) f32 VMEM scratch (lane-dense operand tiles)
    """
    # Zero the padded operand tiles once; padded lanes stay exactly 0 throughout.
    xpad_ref[...] = jnp.zeros_like(xpad_ref)
    hpad_ref[...] = jnp.zeros_like(hpad_ref)

    # Pack the initial hidden state into the lane-dense tile (masked sub-tile store).
    hpad_ref[0:batch_size, 0:hidden_size] = h0_ref[...].reshape(batch_size, hidden_size)

    x_all = x_ref[...]  # (B, S, I) -- tiny, loaded once

    # TODO(synk): for large sequence_length use grid=(seq_len,) instead of unrolling.
    for t in range(sequence_length):
        xpad_ref[0:batch_size, 0:input_size] = x_all[:, t, :]
        acc = (jnp.dot(xpad_ref[...], w_ih_ref[...], preferred_element_type=jnp.float32)
               + jnp.dot(hpad_ref[...], w_hh_ref[...], preferred_element_type=jnp.float32))
        h_new = jnp.tanh(acc + b_ref[...])        # (BP, FP); padded lanes = tanh(0) = 0
        hpad_ref[...] = h_new                     # lane-dense feedback, no repacking
        out_ref[t * batch_size:(t + 1) * batch_size, :] = (
            h_new[0:batch_size, 0:hidden_size])   # narrow write, once per step

    hidden_out_ref[...] = hpad_ref[0:batch_size, 0:hidden_size].reshape(
        num_layers, batch_size, hidden_size)


# Gridless pallas_call: every operand is a full-array VMEM block; the body runs once.
_rnn_forward_call = pl.pallas_call(
    fused_rnn_forward_kernel,
    out_shape=(
        jax.ShapeDtypeStruct((num_layers, batch_size, hidden_size), jnp.float32),
        jax.ShapeDtypeStruct((batch_size * sequence_length, num_classes), jnp.float32),
    ),
    in_specs=[
        pl.BlockSpec(memory_space=pltpu.MemorySpace.VMEM),  # x (B,S,I)
        pl.BlockSpec(memory_space=pltpu.MemorySpace.VMEM),  # hidden (L,B,H)
        pl.BlockSpec(memory_space=pltpu.MemorySpace.VMEM),  # W_ih^T padded (128,128)
        pl.BlockSpec(memory_space=pltpu.MemorySpace.VMEM),  # W_hh^T padded (128,128)
        pl.BlockSpec(memory_space=pltpu.MemorySpace.VMEM),  # fused bias (1,128)
    ],
    out_specs=(
        pl.BlockSpec(memory_space=pltpu.MemorySpace.VMEM),  # hidden_out
        pl.BlockSpec(memory_space=pltpu.MemorySpace.VMEM),  # out
    ),
    scratch_shapes=[
        pltpu.VMEM((BP, FP), jnp.float32),  # padded x tile
        pltpu.VMEM((BP, FP), jnp.float32),  # padded hidden tile (resident across steps)
    ],
)


def prepare_params(params):
    """One-time padding / transpose of the RNN parameters (hoisted out of hot path)."""
    w_ih, w_hh, b_ih, b_hh = params
    w_ih_t = jnp.zeros((FP, FP), jnp.float32)
    w_ih_t = w_ih_t.at[:input_size, :hidden_size].set(w_ih.T.astype(jnp.float32))
    w_hh_t = jnp.zeros((FP, FP), jnp.float32)
    w_hh_t = w_hh_t.at[:hidden_size, :hidden_size].set(w_hh.T.astype(jnp.float32))
    b_pad = jnp.zeros((1, FP), jnp.float32)
    b_pad = b_pad.at[0, :hidden_size].set((b_ih + b_hh).astype(jnp.float32))
    return w_ih_t, w_hh_t, b_pad


@jax.jit
def model_forward(hidden, x, prepared):
    """Mirrors Model.forward:
        x = x.view(batch, seq, input)
        out, hidden = rnn(x, hidden)           # single layer, tanh, batch_first
        return hidden, out.view(-1, num_classes)
    """
    w_ih_t, w_hh_t, b_pad = prepared
    x = x.reshape(batch_size, sequence_length, input_size)
    hidden = hidden.reshape(num_layers, batch_size, hidden_size)
    hidden_out, out = _rnn_forward_call(x, hidden, w_ih_t, w_hh_t, b_pad)
    return hidden_out, out


def init_hidden():
    return jnp.zeros((num_layers, batch_size, hidden_size), jnp.float32)


def init_params(key):
    """Deterministic init matching nn.RNN shapes: uniform(-1/sqrt(H), 1/sqrt(H))."""
    k1, k2, k3, k4 = jax.random.split(key, 4)
    bound = 1.0 / jnp.sqrt(jnp.float32(hidden_size))
    w_ih = jax.random.uniform(k1, (hidden_size, input_size), jnp.float32, -bound, bound)
    w_hh = jax.random.uniform(k2, (hidden_size, hidden_size), jnp.float32, -bound, bound)
    b_ih = jax.random.uniform(k3, (hidden_size,), jnp.float32, -bound, bound)
    b_hh = jax.random.uniform(k4, (hidden_size,), jnp.float32, -bound, bound)
    return w_ih, w_hh, b_ih, b_hh


if __name__ == "__main__":
    key = jax.random.PRNGKey(0)
    pkey, xkey = jax.random.split(key)

    params = init_params(pkey)
    prepared = prepare_params(params)        # one-time weight prep (hoisted)
    hidden = init_hidden()
    x = jax.random.normal(xkey, (batch_size, sequence_length, input_size), jnp.float32)

    hidden_new, out = model_forward(hidden, x, prepared)
    jax.block_until_ready((hidden_new, out))

    # Sanity check against a pure-JAX reference of the RNN cell (seq_len == 1).
    w_ih, w_hh, b_ih, b_hh = params
    h_ref = jnp.tanh(x.reshape(batch_size, input_size) @ w_ih.T
                     + hidden.reshape(batch_size, hidden_size) @ w_hh.T + b_ih + b_hh)
    assert hidden_new.shape == (num_layers, batch_size, hidden_size)
    assert out.shape == (batch_size * sequence_length, num_classes)
    assert jnp.allclose(out, h_ref, atol=1e-5)
    assert jnp.allclose(hidden_new.reshape(batch_size, hidden_size), h_ref, atol=1e-5)

    print("KERNEL_OK")
</pallas_src>

<mosaic_0001>
module attributes {stable_mosaic.version = 11 : i64} {
  func.func @fused_rnn_forward_kernel(%arg0: memref<1x1x5xf32, #tpu.memory_space<vmem>>, %arg1: memref<1x1x5xf32, #tpu.memory_space<vmem>>, %arg2: memref<128x128xf32, #tpu.memory_space<vmem>>, %arg3: memref<128x128xf32, #tpu.memory_space<vmem>>, %arg4: memref<1x128xf32, #tpu.memory_space<vmem>>, %arg5: memref<1x1x5xf32, #tpu.memory_space<vmem>>, %arg6: memref<1x5xf32, #tpu.memory_space<vmem>>, %arg7: memref<8x128xf32, #tpu.memory_space<vmem>>, %arg8: memref<8x128xf32, #tpu.memory_space<vmem>>) attributes {dimension_semantics = [], scalar_prefetch = 0 : i64, scratch_operands = 2 : i64, tpu.core_type = #tpu.core_type<tc>} {
    %cst = arith.constant 0.000000e+00 : f32
    %0 = vector.broadcast %cst : f32 to vector<8x128xf32>
    %c0 = arith.constant 0 : index
    %c0_0 = arith.constant 0 : index
    %1 = vector.load %arg7[%c0, %c0_0] : memref<8x128xf32, #tpu.memory_space<vmem>>, vector<8x128xf32>
    tpu.vector_store %arg7[%c0, %c0_0], %0 {strides = array<i32>} : memref<8x128xf32, #tpu.memory_space<vmem>>, vector<8x128xf32>,
    %cst_1 = arith.constant 0.000000e+00 : f32
    %2 = vector.broadcast %cst_1 : f32 to vector<8x128xf32>
    %c0_2 = arith.constant 0 : index
    %c0_3 = arith.constant 0 : index
    %3 = vector.load %arg8[%c0_2, %c0_3] : memref<8x128xf32, #tpu.memory_space<vmem>>, vector<8x128xf32>
    tpu.vector_store %arg8[%c0_2, %c0_3], %2 {strides = array<i32>} : memref<8x128xf32, #tpu.memory_space<vmem>>, vector<8x128xf32>,
    %c0_4 = arith.constant 0 : index
    %c0_5 = arith.constant 0 : index
    %c0_6 = arith.constant 0 : index
    %4 = vector.load %arg1[%c0_4, %c0_5, %c0_6] : memref<1x1x5xf32, #tpu.memory_space<vmem>>, vector<1x1x5xf32>
    %5 = vector.shape_cast %4 : vector<1x1x5xf32> to vector<1x5xf32>
    %c0_7 = arith.constant 0 : index
    %c0_8 = arith.constant 0 : index
    %6 = vector.load %arg8[%c0_7, %c0_8] : memref<8x128xf32, #tpu.memory_space<vmem>>, vector<1x5xf32>
    tpu.vector_store %arg8[%c0_7, %c0_8], %5 {strides = array<i32>} : memref<8x128xf32, #tpu.memory_space<vmem>>, vector<1x5xf32>,
    %c0_9 = arith.constant 0 : index
    %c0_10 = arith.constant 0 : index
    %c0_11 = arith.constant 0 : index
    %7 = vector.load %arg0[%c0_9, %c0_10, %c0_11] : memref<1x1x5xf32, #tpu.memory_space<vmem>>, vector<1x1x5xf32>
    %8 = vector.shape_cast %7 : vector<1x1x5xf32> to vector<1x5xf32>
    %c0_12 = arith.constant 0 : index
    %c0_13 = arith.constant 0 : index
    %9 = vector.load %arg7[%c0_12, %c0_13] : memref<8x128xf32, #tpu.memory_space<vmem>>, vector<1x5xf32>
    tpu.vector_store %arg7[%c0_12, %c0_13], %8 {strides = array<i32>} : memref<8x128xf32, #tpu.memory_space<vmem>>, vector<1x5xf32>,
    %c0_14 = arith.constant 0 : index
    %c0_15 = arith.constant 0 : index
    %10 = vector.load %arg7[%c0_14, %c0_15] : memref<8x128xf32, #tpu.memory_space<vmem>>, vector<8x128xf32>
    %c0_16 = arith.constant 0 : index
    %c0_17 = arith.constant 0 : index
    %11 = vector.load %arg2[%c0_16, %c0_17] : memref<128x128xf32, #tpu.memory_space<vmem>>, vector<128x128xf32>
    %cst_18 = arith.constant dense<0.000000e+00> : vector<8x128xf32>
    %12 = tpu.matmul %10, %11, %cst_18 {dimension_numbers = #tpu.dot_dimension_numbers<[1], [0], [0], [1], [0, 0, 1, 1], [], []>} : vector<8x128xf32>, vector<128x128xf32>, vector<8x128xf32> -> vector<8x128xf32>
    %c0_19 = arith.constant 0 : index
    %c0_20 = arith.constant 0 : index
    %13 = vector.load %arg8[%c0_19, %c0_20] : memref<8x128xf32, #tpu.memory_space<vmem>>, vector<8x128xf32>
    %c0_21 = arith.constant 0 : index
    %c0_22 = arith.constant 0 : index
    %14 = vector.load %arg3[%c0_21, %c0_22] : memref<128x128xf32, #tpu.memory_space<vmem>>, vector<128x128xf32>
    %cst_23 = arith.constant dense<0.000000e+00> : vector<8x128xf32>
    %15 = tpu.matmul %13, %14, %cst_23 {dimension_numbers = #tpu.dot_dimension_numbers<[1], [0], [0], [1], [0, 0, 1, 1], [], []>} : vector<8x128xf32>, vector<128x128xf32>, vector<8x128xf32> -> vector<8x128xf32>
    %16 = arith.addf %12, %15 : vector<8x128xf32>
    %c0_24 = arith.constant 0 : index
    %c0_25 = arith.constant 0 : index
    %17 = vector.load %arg4[%c0_24, %c0_25] : memref<1x128xf32, #tpu.memory_space<vmem>>, vector<1x128xf32>
    %18 = vector.broadcast %17 : vector<1x128xf32> to vector<8x128xf32>
    %19 = arith.addf %16, %18 : vector<8x128xf32>
    %20 = math.tanh %19 : vector<8x128xf32>
    %c0_26 = arith.constant 0 : index
    %c0_27 = arith.constant 0 : index
    %21 = vector.load %arg8[%c0_26, %c0_27] : memref<8x128xf32, #tpu.memory_space<vmem>>, vector<8x128xf32>
    tpu.vector_store %arg8[%c0_26, %c0_27], %20 {strides = array<i32>} : memref<8x128xf32, #tpu.memory_space<vmem>>, vector<8x128xf32>,
    %22 = vector.extract_strided_slice %20 {offsets = [0, 0], sizes = [1, 5], strides = [1, 1]} : vector<8x128xf32> to vector<1x5xf32>
    %c0_28 = arith.constant 0 : index
    %c0_29 = arith.constant 0 : index
    %23 = vector.load %arg6[%c0_28, %c0_29] : memref<1x5xf32, #tpu.memory_space<vmem>>, vector<1x5xf32>
    tpu.vector_store %arg6[%c0_28, %c0_29], %22 {strides = array<i32>} : memref<1x5xf32, #tpu.memory_space<vmem>>, vector<1x5xf32>,
    %c0_30 = arith.constant 0 : index
    %c0_31 = arith.constant 0 : index
    %24 = vector.load %arg8[%c0_30, %c0_31] : memref<8x128xf32, #tpu.memory_space<vmem>>, vector<1x5xf32>
    %25 = vector.shape_cast %24 : vector<1x5xf32> to vector<1x1x5xf32>
    %c0_32 = arith.constant 0 : index
    %c0_33 = arith.constant 0 : index
    %c0_34 = arith.constant 0 : index
    %26 = vector.load %arg5[%c0_32, %c0_33, %c0_34] : memref<1x1x5xf32, #tpu.memory_space<vmem>>, vector<1x1x5xf32>
    tpu.vector_store %arg5[%c0_32, %c0_33, %c0_34], %25 {strides = array<i32>} : memref<1x1x5xf32, #tpu.memory_space<vmem>>, vector<1x1x5xf32>,
    return
  }
}

</mosaic_0001>

<llo_original>
// kernel: model_forward.1
$region0: #{model_forward.1}
  #allocation0 [shape = 'u32[]', space=smem, size = 0x4, offset = 0x4, fixed_abs, tag = 'smem constant byte address 0x4 - core index']
  #allocation1 [shape = 'u32[144,128]{1,0:T(1,128)}', space=vmem, size = 0x12000, scoped, tag = 'internal scratch']
  #allocation2 [shape = 'f32[8,128]{1,0:T(8,128)}', space=vmem, size = 0x1000, scoped, tag = 'scratch operand']
  #allocation3 [shape = 'f32[8,128]{1,0:T(8,128)}', space=vmem, size = 0x1000, scoped, tag = 'scratch operand']
  %s0 = inlined_call_operand.vmem [shape: f32[1,1,5], index: 0, kind: input, shape index: {}]
  %s1 = inlined_call_operand.hbm [shape: f32[1,1,5], index: 1, kind: input, shape index: {}]
  %s2 = inlined_call_operand.hbm [shape: f32[128,128], index: 2, kind: input, shape index: {}]
  %s3 = inlined_call_operand.hbm [shape: f32[128,128], index: 3, kind: input, shape index: {}]
  %s4 = inlined_call_operand.vmem [shape: f32[1,128], index: 4, kind: input, shape index: {}]
  %s5 = inlined_call_operand.hbm [shape: f32[1,1,5], index: 5, kind: output, shape index: {0}]
  %s6 = inlined_call_operand.hbm [shape: f32[1,5], index: 6, kind: output, shape index: {1}]
  %7 = xla_tuple %s5, %s6
  %s8 = sld [smem:[#allocation0]]
  $region50: #{model_forward.1} parent=0
    _
  %s10 = ssub.s32 1, %s8
  %s11 = scalar_select 0, %s10, %s8
  $region1: #{model_forward.1} parent=0
    #allocation4 [shape = 'u8[512]{0}', space=vmem, size = 0x400, scoped, tag = 'input window, operand 1, single buffered']
    #allocation5 [shape = 's32[1]{0}', space=sflag, size = 0x4, scoped, tag = 'scoped memory for model_forward.1']
    #allocation6 [shape = 's32[1]{0}', space=sflag, size = 0x4, scoped, tag = 'scoped memory for model_forward.1']
    #allocation7 [shape = 'u8[65536]{0}', space=vmem, size = 0x10000, scoped, tag = 'input window, operand 2, single buffered']
    #allocation8 [shape = 's32[1]{0}', space=sflag, size = 0x4, scoped, tag = 'scoped memory for model_forward.1']
    #allocation9 [shape = 'u8[65536]{0}', space=vmem, size = 0x10000, scoped, tag = 'input window, operand 3, single buffered']
    #allocation10 [shape = 'u8[512]{0}', space=vmem, size = 0x400, scoped, tag = 'output window, operand 0, single buffered']
    #allocation11 [shape = 'u8[512]{0}', space=vmem, size = 0x400, scoped, tag = 'output window, operand 1, single buffered']
    #allocation12 [shape = 's32[1]{0}', space=sflag, size = 0x4, scoped, tag = 'scoped memory for model_forward.1']
    %12 = vsyncpa [#allocation5], 0
    %13 = vsyncpa [#allocation8], 0
    %14 = vsyncpa [#allocation6], 0
    %15 = vsyncpa [#allocation12], 0
    // Predicated region
    $region2: #{model_forward.1} parent=1 // pred_check
      _
    $region3: #{model_forward.1} parent=1 // pred_check_branch
      %17 = sbr.rel (0) target = $region5
    $region4: #{model_forward.1} parent=1 // pred_region
      _
    $region5: #{model_forward.1} parent=1 // pred_fallthru
      _
    // Predicated region
    $region6: #{model_forward.1} parent=1 // pred_check
      _
    $region7: #{model_forward.1} parent=1 // pred_check_branch
      %19 = sbr.rel (0) target = $region9
    $region8: #{model_forward.1} parent=1 // pred_region
      %s21 = ssub.s32 16, 16
      %22 = vsyncadd [#allocation5], %s21
      %s24 = sshll.u32 [#allocation4], 4
      %s25 = int_to_ptr.vmem [resolvable:$true] %s24
      %27 = dma.hbm_to_vmem [thread:$0]  %s1, 16, %s25, [#allocation5]
    $region9: #{model_forward.1} parent=1 // pred_fallthru
      _
    // Predicated region
    $region10: #{model_forward.1} parent=1 // pred_check
      _
    $region11: #{model_forward.1} parent=1 // pred_check_branch
      %29 = sbr.rel (0) target = $region13
    $region12: #{model_forward.1} parent=1 // pred_region
      %s31 = ssub.s32 2048, 2048
      %32 = vsyncadd [#allocation8], %s31
      %s33 = sshll.u32 [#allocation7], 4
      %s34 = int_to_ptr.vmem [resolvable:$true] %s33
      %39 = dma.hbm_to_vmem [thread:$0]  %s2, 2048, %s34, [#allocation8], 128, 128, 8
    $region13: #{model_forward.1} parent=1 // pred_fallthru
      _
    // Predicated region
    $region14: #{model_forward.1} parent=1 // pred_check
      _
    $region15: #{model_forward.1} parent=1 // pred_check_branch
      %41 = sbr.rel (0) target = $region17
    $region16: #{model_forward.1} parent=1 // pred_region
      %s43 = ssub.s32 2048, 2048
      %44 = vsyncadd [#allocation8], %s43
      %s45 = sshll.u32 [#allocation9], 4
      %s46 = int_to_ptr.vmem [resolvable:$true] %s45
      %51 = dma.hbm_to_vmem [thread:$0]  %s3, 2048, %s46, [#allocation8], 128, 128, 8
    $region17: #{model_forward.1} parent=1 // pred_fallthru
      _
    // Predicated region
    $region18: #{model_forward.1} parent=1 // pred_check
      _
    $region19: #{model_forward.1} parent=1 // pred_check_branch
      %53 = sbr.rel (0) target = $region21
    $region20: #{model_forward.1} parent=1 // pred_region
      _
    $region21: #{model_forward.1} parent=1 // pred_fallthru
      _
    // Predicated region
    $region22: #{model_forward.1} parent=1 // pred_check
      _
    $region23: #{model_forward.1} parent=1 // pred_check_branch
      %55 = sbr.rel (0) target = $region25
    $region24: #{model_forward.1} parent=1 // pred_region
      %56 = dma.done [#allocation5], 16
    $region25: #{model_forward.1} parent=1 // pred_fallthru
      _
    // Predicated region
    $region26: #{model_forward.1} parent=1 // pred_check
      _
    $region27: #{model_forward.1} parent=1 // pred_check_branch
      %58 = sbr.rel (0) target = $region29
    $region28: #{model_forward.1} parent=1 // pred_region
      %59 = dma.done [#allocation8], 2048
    $region29: #{model_forward.1} parent=1 // pred_fallthru
      _
    // Predicated region
    $region30: #{model_forward.1} parent=1 // pred_check
      _
    $region31: #{model_forward.1} parent=1 // pred_check_branch
      %61 = sbr.rel (0) target = $region33
    $region32: #{model_forward.1} parent=1 // pred_region
      %62 = dma.done [#allocation8], 2048
    $region33: #{model_forward.1} parent=1 // pred_fallthru
      _
    %63 = vst [vmem:[#allocation2] sm:$0xff] 0.0
    %64 = vst [vmem:[#allocation3] sm:$0xff] 0.0
    %v65 = vld [vmem:[#allocation4] sm:$0x1]
    %vm66 = vcmask 32768
    %67 = vst.msk [vmem:[#allocation3] sm:$0x1] %vm66, %v65
    %v68 = vld [vmem:[%s0] sm:$0x1]
    %69 = vst.msk [vmem:[#allocation2] sm:$0x1] %vm66, %v68
    %v70 = vld [vmem:[#allocation2] sm:$0xff]
    %v71 = vld [vmem:[#allocation7] sm:$0xff]
    %v72 = vld [vmem:[#allocation7 + $0x8] sm:$0xff]
    %v73 = vld [vmem:[#allocation7 + $0x10] sm:$0xff]
    %v74 = vld [vmem:[#allocation7 + $0x18] sm:$0xff]
    %v75 = vld [vmem:[#allocation7 + $0x20] sm:$0xff]
    %v76 = vld [vmem:[#allocation7 + $0x28] sm:$0xff]
    %v77 = vld [vmem:[#allocation7 + $0x30] sm:$0xff]
    %v78 = vld [vmem:[#allocation7 + $0x38] sm:$0xff]
    %v79 = vld [vmem:[#allocation7 + $0x40] sm:$0xff]
    %v80 = vld [vmem:[#allocation7 + $0x48] sm:$0xff]
    %v81 = vld [vmem:[#allocation7 + $0x50] sm:$0xff]
    %v82 = vld [vmem:[#allocation7 + $0x58] sm:$0xff]
    %v83 = vld [vmem:[#allocation7 + $0x60] sm:$0xff]
    %v84 = vld [vmem:[#allocation7 + $0x68] sm:$0xff]
    %v85 = vld [vmem:[#allocation7 + $0x70] sm:$0xff]
    %v86 = vld [vmem:[#allocation7 + $0x78] sm:$0xff]
    %v87 = vld [vmem:[#allocation3] sm:$0xff]
    %v88 = vld [vmem:[#allocation9] sm:$0xff]
    %v89 = vld [vmem:[#allocation9 + $0x8] sm:$0xff]
    %v90 = vld [vmem:[#allocation9 + $0x10] sm:$0xff]
    %v91 = vld [vmem:[#allocation9 + $0x18] sm:$0xff]
    %v92 = vld [vmem:[#allocation9 + $0x20] sm:$0xff]
    %v93 = vld [vmem:[#allocation9 + $0x28] sm:$0xff]
    %v94 = vld [vmem:[#allocation9 + $0x30] sm:$0xff]
    %v95 = vld [vmem:[#allocation9 + $0x38] sm:$0xff]
    %v96 = vld [vmem:[#allocation9 + $0x40] sm:$0xff]
    %v97 = vld [vmem:[#allocation9 + $0x48] sm:$0xff]
    %v98 = vld [vmem:[#allocation9 + $0x50] sm:$0xff]
    %v99 = vld [vmem:[#allocation9 + $0x58] sm:$0xff]
    %v100 = vld [vmem:[#allocation9 + $0x60] sm:$0xff]
    %v101 = vld [vmem:[#allocation9 + $0x68] sm:$0xff]
    %v102 = vld [vmem:[#allocation9 + $0x70] sm:$0xff]
    %v103 = vld [vmem:[#allocation9 + $0x78] sm:$0xff]
    %104 = vmatprep.subr.mxu0 0.0
    %105 = vmatpush1.msra.mxu0 %v88
    %106 = vmatprep.subr.mxu0 0.0
    %107 = vmatpush1.msra.mxu0 %v89
    %108 = vmatprep.subr.mxu0 0.0
    %109 = vmatpush1.msra.mxu0 %v90
    %110 = vmatprep.subr.mxu0 0.0
    %111 = vmatpush1.msra.mxu0 %v91
    %112 = vmatprep.subr.mxu0 0.0
    %113 = vmatpush1.msra.mxu0 %v92
    %114 = vmatprep.subr.mxu0 0.0
    %115 = vmatpush1.msra.mxu0 %v93
    %116 = vmatprep.subr.mxu0 0.0
    %117 = vmatpush1.msra.mxu0 %v94
    %118 = vmatprep.subr.mxu0 0.0
    %119 = vmatpush1.msra.mxu0 %v95
    %120 = vmatprep.subr.mxu0 0.0
    %121 = vmatpush1.msra.mxu0 %v96
    %122 = vmatprep.subr.mxu0 0.0
    %123 = vmatpush1.msra.mxu0 %v97
    %124 = vmatprep.subr.mxu0 0.0
    %125 = vmatpush1.msra.mxu0 %v98
    %126 = vmatprep.subr.mxu0 0.0
    %127 = vmatpush1.msra.mxu0 %v99
    %128 = vmatprep.subr.mxu0 0.0
    %129 = vmatpush1.msra.mxu0 %v100
    %130 = vmatprep.subr.mxu0 0.0
    %131 = vmatpush1.msra.mxu0 %v101
    %132 = vmatprep.subr.mxu0 0.0
    %133 = vmatpush1.msra.mxu0 %v102
    %134 = vmatprep.subr.mxu0 0.0
    %135 = vmatpush1.msra.mxu0 %v103
    %136 = vmatprep.subr.mxu0 0.0
    %137 = vmatpush1.msra.mxu0 0.0
    %138 = vmatprep.subr.mxu0 0.0
    %139 = vmatpush1.msra.mxu0 0.0
    %140 = vmatprep.subr.mxu0 0.0
    %141 = vmatpush1.msra.mxu0 0.0
    %142 = vmatprep.subr.mxu0 0.0
    %143 = vmatpush1.msra.mxu0 0.0
    %144 = vmatprep.subr.mxu0 0.0
    %145 = vmatpush1.msra.mxu0 0.0
    %146 = vmatprep.subr.mxu0 0.0
    %147 = vmatpush1.msra.mxu0 0.0
    %148 = vmatprep.subr.mxu0 0.0
    %149 = vmatpush1.msra.mxu0 0.0
    %150 = vmatprep.subr.mxu0 0.0
    %151 = vmatpush1.msra.mxu0 0.0
    %152 = vmatprep.subr.mxu0 0.0
    %153 = vmatpush1.msra.mxu0 0.0
    %154 = vmatprep.subr.mxu0 0.0
    %155 = vmatpush1.msra.mxu0 0.0
    %156 = vmatprep.subr.mxu0 0.0
    %157 = vmatpush1.msra.mxu0 0.0
    %158 = vmatprep.subr.mxu0 0.0
    %159 = vmatpush1.msra.mxu0 0.0
    %160 = vmatprep.subr.mxu0 0.0
    %161 = vmatpush1.msra.mxu0 0.0
    %162 = vmatprep.subr.mxu0 0.0
    %163 = vmatpush1.msra.mxu0 0.0
    %164 = vmatprep.subr.mxu0 0.0
    %165 = vmatpush1.msra.mxu0 0.0
    %166 = vmatprep.subr.mxu0 0.0
    %167 = vmatpush1.msra.mxu0 0.0
    %168 = vmatprep.mubr.f32.mxu0 0.0
    %169 = vmatmul.mubr.f32.gmra.mrb[0].mxu0 %v87
    %v170 = vpop.f32.mrb[0].mxu0
    %v171 = vadd.f32 0.0, %v170
    %v172 = vpop.f32.mrb[0].mxu0
    %173 = vdwg.mxu0
    %174 = vmatprep.subr.mxu0 0.0
    %175 = vmatpush1.msra.mxu0 %v71
    %176 = vmatprep.subr.mxu0 0.0
    %177 = vmatpush1.msra.mxu0 %v72
    %178 = vmatprep.subr.mxu0 0.0
    %179 = vmatpush1.msra.mxu0 %v73
    %180 = vmatprep.subr.mxu0 0.0
    %181 = vmatpush1.msra.mxu0 %v74
    %182 = vmatprep.subr.mxu0 0.0
    %183 = vmatpush1.msra.mxu0 %v75
    %184 = vmatprep.subr.mxu0 0.0
    %185 = vmatpush1.msra.mxu0 %v76
    %186 = vmatprep.subr.mxu0 0.0
    %187 = vmatpush1.msra.mxu0 %v77
    %188 = vmatprep.subr.mxu0 0.0
    %189 = vmatpush1.msra.mxu0 %v78
    %190 = vmatprep.subr.mxu0 0.0
    %191 = vmatpush1.msra.mxu0 %v79
    %192 = vmatprep.subr.mxu0 0.0
    %193 = vmatpush1.msra.mxu0 %v80
    %194 = vmatprep.subr.mxu0 0.0
    %195 = vmatpush1.msra.mxu0 %v81
    %196 = vmatprep.subr.mxu0 0.0
    %197 = vmatpush1.msra.mxu0 %v82
    %198 = vmatprep.subr.mxu0 0.0
    %199 = vmatpush1.msra.mxu0 %v83
    %200 = vmatprep.subr.mxu0 0.0
    %201 = vmatpush1.msra.mxu0 %v84
    %202 = vmatprep.subr.mxu0 0.0
    %203 = vmatpush1.msra.mxu0 %v85
    %204 = vmatprep.subr.mxu0 0.0
    %205 = vmatpush1.msra.mxu0 %v86
    %206 = vmatprep.subr.mxu0 0.0
    %207 = vmatpush1.msra.mxu0 0.0
    %208 = vmatprep.subr.mxu0 0.0
    %209 = vmatpush1.msra.mxu0 0.0
    %210 = vmatprep.subr.mxu0 0.0
    %211 = vmatpush1.msra.mxu0 0.0
    %212 = vmatprep.subr.mxu0 0.0
    %213 = vmatpush1.msra.mxu0 0.0
    %214 = vmatprep.subr.mxu0 0.0
    %215 = vmatpush1.msra.mxu0 0.0
    %216 = vmatprep.subr.mxu0 0.0
    %217 = vmatpush1.msra.mxu0 0.0
    %218 = vmatprep.subr.mxu0 0.0
    %219 = vmatpush1.msra.mxu0 0.0
    %220 = vmatprep.subr.mxu0 0.0
    %221 = vmatpush1.msra.mxu0 0.0
    %222 = vmatprep.subr.mxu0 0.0
    %223 = vmatpush1.msra.mxu0 0.0
    %224 = vmatprep.subr.mxu0 0.0
    %225 = vmatpush1.msra.mxu0 0.0
    %226 = vmatprep.subr.mxu0 0.0
    %227 = vmatpush1.msra.mxu0 0.0
    %228 = vmatprep.subr.mxu0 0.0
    %229 = vmatpush1.msra.mxu0 0.0
    %230 = vmatprep.subr.mxu0 0.0
    %231 = vmatpush1.msra.mxu0 0.0
    %232 = vmatprep.subr.mxu0 0.0
    %233 = vmatpush1.msra.mxu0 0.0
    %234 = vmatprep.subr.mxu0 0.0
    %235 = vmatpush1.msra.mxu0 0.0
    %236 = vmatprep.subr.mxu0 0.0
    %237 = vmatpush1.msra.mxu0 0.0
    %238 = vmatprep.mubr.f32.mxu0 0.0
    %239 = vmatmul.mubr.f32.gmra.mrb[0].mxu0 %v70
    %v240 = vpop.f32.mrb[0].mxu0
    %v241 = vadd.f32 %v171, %v240
    %v242 = vpop.f32.mrb[0].mxu0
    %243 = vdwg.mxu0
    %v244 = vld [vmem:[%s4] sm:$0x1]
    %v246 = vlaneseq
    %v247 = vshrl.u32 %v246, 7
    %v248 = vsub.s32 0, %v247
    %v249 = vrot.slane %v244, %v248
    %v251 = vadd.f32 %v241, %v249
    %v252 = vtanh.pop %v251
    %253 = vst [vmem:[#allocation3] sm:$0xff] %v252
    %254 = vst.msk [vmem:[#allocation11] sm:$0x1] %vm66, %v252
    %v255 = vld [vmem:[#allocation3] sm:$0x1]
    %256 = vst.msk [vmem:[#allocation10] sm:$0x1] %vm66, %v255
    // Predicated region
    $region34: #{model_forward.1} parent=1 // pred_check
      _
    $region35: #{model_forward.1} parent=1 // pred_check_branch
      %258 = sbr.rel (0) target = $region37
    $region36: #{model_forward.1} parent=1 // pred_region
      %s260 = ssub.s32 16, 16
      %261 = vsyncadd [#allocation6], %s260
      %s263 = sshll.u32 [#allocation10], 4
      %s264 = int_to_ptr.vmem [resolvable:$true] %s263
      %266 = dma.vmem_to_hbm [thread:$0]  %s264, 16, %s5, [#allocation6]
    $region37: #{model_forward.1} parent=1 // pred_fallthru
      _
    // Predicated region
    $region38: #{model_forward.1} parent=1 // pred_check
      _
    $region39: #{model_forward.1} parent=1 // pred_check_branch
      %268 = sbr.rel (0) target = $region41
    $region40: #{model_forward.1} parent=1 // pred_region
      %s270 = ssub.s32 16, 16
      %271 = vsyncadd [#allocation12], %s270
      %s273 = sshll.u32 [#allocation11], 4
      %s274 = int_to_ptr.vmem [resolvable:$true] %s273
      %276 = dma.vmem_to_hbm [thread:$0]  %s274, 16, %s6, [#allocation12]
    $region41: #{model_forward.1} parent=1 // pred_fallthru
      _
    // Predicated region
    $region42: #{model_forward.1} parent=1 // pred_check
      _
    $region43: #{model_forward.1} parent=1 // pred_check_branch
      %278 = sbr.rel (0) target = $region45
    $region44: #{model_forward.1} parent=1 // pred_region
      %279 = dma.done [#allocation6], 16
    $region45: #{model_forward.1} parent=1 // pred_fallthru
      _
    // Predicated region
    $region46: #{model_forward.1} parent=1 // pred_check
      _
    $region47: #{model_forward.1} parent=1 // pred_check_branch
      %281 = sbr.rel (0) target = $region49
    $region48: #{model_forward.1} parent=1 // pred_region
      %282 = dma.done [#allocation12], 16
    $region49: #{model_forward.1} parent=1 // pred_fallthru
      _
    %283 = vsyncpa [#allocation5], 1
    %284 = vsyncpa [#allocation8], 1
    %285 = vsyncpa [#allocation6], 1
    %286 = vsyncpa [#allocation12], 1

</llo_original>
